<compile_context>
chip_gen: v6e
topology: v6e:2x2x1
jax: 0.10.0
libtpu: 0.0.40
codegen_flags: <defaults>
</compile_context>

<pallas_src>
import jax
import jax.numpy as jnp
from jax.experimental import pallas as pl
from jax.experimental.pallas import tpu as pltpu

IN_DIM, H1, H2, OUT_DIM = 4, 50, 30, 3
LANES = 128
IN_PAD = 8     # x padded to 8 feature columns (one sublane group) for the fc1 MXU dot
OUT_PAD = 8    # narrow lane-masked output store; wrapper slices to 3

# Row offsets inside the packed (TOTAL_ROWS, 128) parameter buffer.
# Every section starts on a sublane (8-row) boundary.
ROWS_W1 = 0      # rows [0, 8)     : w1, actual (4, 50); rows 4..7 zero
ROW_B1 = 8       # rows [8, 16)    : b1 in row 8, actual (50,)
ROWS_W2 = 16     # rows [16, 144)  : w2, actual (50, 30)
ROW_B2 = 144     # rows [144, 152) : b2 in row 144, actual (30,)
ROWS_W3 = 152    # rows [152, 280) : w3, actual (30, 3)
ROW_B3 = 280     # rows [280, 288) : b3 in row 280, actual (3,)
TOTAL_ROWS = 288


def mlp_kernel(x_ref, p_ref, o_ref):
    x = x_ref[...]                                            # (TB, 8) f32, cols 4..7 are 0

    # ---- fc1 + ReLU on the MXU: (TB,8) @ (8,128). Padded x cols / W1 rows are zero.
    h1 = (jnp.dot(x, p_ref[ROWS_W1:ROWS_W1 + IN_PAD, :],
                  preferred_element_type=jnp.float32)
          + p_ref[ROW_B1:ROW_B1 + 1, :])
    a1 = jnp.maximum(h1, 0.0)                                 # padded lanes stay 0

    # ---- fc2 + sigmoid: dense 128x128 MXU matmul; single-transcendental sigmoid
    # via tanh (one EUP push per vreg instead of exp + exact reciprocal).
    h2 = (jnp.dot(a1, p_ref[ROWS_W2:ROWS_W2 + LANES, :],
                  preferred_element_type=jnp.float32)
          + p_ref[ROW_B2:ROW_B2 + 1, :])
    a2 = 0.5 * (jnp.tanh(0.5 * h2) + 1.0)

    # ---- fc3: dense 128x128 MXU matmul. Padded W3 rows are zero, so the
    # sigmoid(0)=0.5 values in a2's padded lanes contribute nothing. Only the
    # first OUT_PAD lanes are stored (narrow output -> 16x less HBM writeback).
    out = (jnp.dot(a2, p_ref[ROWS_W3:ROWS_W3 + LANES, :],
                   preferred_element_type=jnp.float32)
           + p_ref[ROW_B3:ROW_B3 + 1, :])
    o_ref[...] = out[:, :OUT_PAD].astype(o_ref.dtype)


def pack_params(w1, b1, w2, b2, w3, b3):
    """Zero-pad and pack all parameters into one (288, 128) f32 buffer."""
    p = jnp.zeros((TOTAL_ROWS, LANES), jnp.float32)
    p = p.at[ROWS_W1:ROWS_W1 + IN_DIM, :H1].set(w1)
    p = p.at[ROW_B1, :H1].set(b1.reshape(-1))
    p = p.at[ROWS_W2:ROWS_W2 + H1, :H2].set(w2)
    p = p.at[ROW_B2, :H2].set(b2.reshape(-1))
    p = p.at[ROWS_W3:ROWS_W3 + H2, :OUT_DIM].set(w3)
    p = p.at[ROW_B3, :OUT_DIM].set(b3.reshape(-1))
    return p


def _round_up(n, m):
    return (n + m - 1) // m * m


def my_network_forward(x, packed):
    """x: (B, 4) f32, packed: (288, 128) f32 from pack_params. Returns (B, 3)."""
    B = x.shape[0]
    # Batch tile: multiple of 8 sublanes, capped at 2048 rows so the per-step
    # live set (~5-6 MiB) stays under v5e's 16 MiB scoped-VMEM default without
    # overrides; ceil(B/2) forces >= 2 grid steps when B > tile so v7x shards
    # the "parallel" axis across both TensorCores.
    tb = min(2048, max(8, _round_up(pl.cdiv(B, 2), 8)))
    b_pad = _round_up(B, tb)
    # Pad batch to a tile multiple and features to IN_PAD zero columns (needed
    # for the fc1 MXU dot; tiny vs. output traffic, so one fused pad is fine).
    x_pad = jnp.pad(x.astype(jnp.float32),
                    ((0, b_pad - B), (0, IN_PAD - IN_DIM)))

    cost = pl.CostEstimate(
        flops=2 * b_pad * (IN_PAD * LANES + LANES * LANES + LANES * LANES),
        transcendentals=b_pad * LANES,
        bytes_accessed=4 * (b_pad * IN_PAD + TOTAL_ROWS * LANES + b_pad * OUT_PAD),
    )

    out = pl.pallas_call(
        mlp_kernel,
        out_shape=jax.ShapeDtypeStruct((b_pad, OUT_PAD), jnp.float32),
        grid=(b_pad // tb,),
        in_specs=[
            pl.BlockSpec((tb, IN_PAD), lambda i: (i, 0)),          # batch tile of x
            pl.BlockSpec((TOTAL_ROWS, LANES), lambda i: (0, 0)),   # params, VMEM-resident
        ],
        out_specs=pl.BlockSpec((tb, OUT_PAD), lambda i: (i, 0)),   # narrow output store
        compiler_params=pltpu.CompilerParams(
            dimension_semantics=("parallel",)),
        cost_estimate=cost,
    )(x_pad, packed)
    return out[:B, :OUT_DIM]


def init_params(key):
    """Deterministic init mimicking PyTorch nn.Linear default U(-1/sqrt(fan_in), +)."""
    dims = [(IN_DIM, H1), (H1, H2), (H2, OUT_DIM)]
    params = []
    for fan_in, fan_out in dims:
        kw, kb, key = jax.random.split(key, 3)
        bound = 1.0 / jnp.sqrt(fan_in)
        w = jax.random.uniform(kw, (fan_in, fan_out), jnp.float32, -bound, bound)
        b = jax.random.uniform(kb, (1, fan_out), jnp.float32, -bound, bound)
        params += [w, b]
    return params


def reference_forward(x, params):
    w1, b1, w2, b2, w3, b3 = params
    a1 = jnp.maximum(x @ w1 + b1, 0.0)
    a2 = jax.nn.sigmoid(a1 @ w2 + b2)
    return a2 @ w3 + b3


if __name__ == "__main__":
    key = jax.random.PRNGKey(0)
    kx, kp = jax.random.split(key)
    batch = 8
    x = jax.random.normal(kx, (batch, IN_DIM), dtype=jnp.float32)
    params = init_params(kp)
    packed = pack_params(*params)

    out = my_network_forward(x, packed)
    jax.block_until_ready(out)

    ref = reference_forward(x, params)
    assert out.shape == (batch, OUT_DIM)
    err = float(jnp.max(jnp.abs(out - ref)))
    assert jnp.allclose(out, ref, atol=1e-5, rtol=1e-5), err
    print("KERNEL_OK")
</pallas_src>

<mosaic_0001>
module attributes {stable_mosaic.version = 11 : i64} {
  func.func @mlp_kernel(%arg0: i32, %arg1: memref<8x8xf32, #tpu.memory_space<vmem>>, %arg2: memref<288x128xf32, #tpu.memory_space<vmem>>, %arg3: memref<8x8xf32, #tpu.memory_space<vmem>>) attributes {dimension_semantics = [#tpu.dimension_semantics<parallel>], iteration_bounds = array<i64: 1>, scalar_prefetch = 0 : i64, scratch_operands = 0 : i64, tpu.core_type = #tpu.core_type<tc>, window_params = [{transform_indices = @transform_0, window_bounds = array<i64: 8, 8>}, {pipeline_mode = #tpu.pipeline_mode<synchronous>, transform_indices = @transform_1, window_bounds = array<i64: 288, 128>}, {transform_indices = @transform_2, window_bounds = array<i64: 8, 8>}]} {
    %c0 = arith.constant 0 : index
    %c0_0 = arith.constant 0 : index
    %0 = vector.load %arg1[%c0, %c0_0] : memref<8x8xf32, #tpu.memory_space<vmem>>, vector<8x8xf32>
    %c0_1 = arith.constant 0 : index
    %c0_2 = arith.constant 0 : index
    %1 = vector.load %arg2[%c0_1, %c0_2] : memref<288x128xf32, #tpu.memory_space<vmem>>, vector<8x128xf32>
    %cst = arith.constant dense<0.000000e+00> : vector<8x128xf32>
    %2 = tpu.matmul %0, %1, %cst {dimension_numbers = #tpu.dot_dimension_numbers<[1], [0], [0], [1], [0, 0, 1, 1], [], []>} : vector<8x8xf32>, vector<8x128xf32>, vector<8x128xf32> -> vector<8x128xf32>
    %c8 = arith.constant 8 : index
    %c0_3 = arith.constant 0 : index
    %3 = vector.load %arg2[%c8, %c0_3] : memref<288x128xf32, #tpu.memory_space<vmem>>, vector<1x128xf32>
    %4 = vector.broadcast %3 : vector<1x128xf32> to vector<8x128xf32>
    %5 = arith.addf %2, %4 : vector<8x128xf32>
    %cst_4 = arith.constant 0.000000e+00 : f32
    %6 = vector.broadcast %cst_4 : f32 to vector<8x128xf32>
    %7 = arith.maximumf %5, %6 : vector<8x128xf32>
    %c16 = arith.constant 16 : index
    %c0_5 = arith.constant 0 : index
    %8 = vector.load %arg2[%c16, %c0_5] : memref<288x128xf32, #tpu.memory_space<vmem>>, vector<128x128xf32>
    %cst_6 = arith.constant dense<0.000000e+00> : vector<8x128xf32>
    %9 = tpu.matmul %7, %8, %cst_6 {dimension_numbers = #tpu.dot_dimension_numbers<[1], [0], [0], [1], [0, 0, 1, 1], [], []>} : vector<8x128xf32>, vector<128x128xf32>, vector<8x128xf32> -> vector<8x128xf32>
    %c144 = arith.constant 144 : index
    %c0_7 = arith.constant 0 : index
    %10 = vector.load %arg2[%c144, %c0_7] : memref<288x128xf32, #tpu.memory_space<vmem>>, vector<1x128xf32>
    %11 = vector.broadcast %10 : vector<1x128xf32> to vector<8x128xf32>
    %12 = arith.addf %9, %11 : vector<8x128xf32>
    %cst_8 = arith.constant 5.000000e-01 : f32
    %13 = vector.broadcast %cst_8 : f32 to vector<8x128xf32>
    %14 = arith.mulf %13, %12 : vector<8x128xf32>
    %15 = math.tanh %14 : vector<8x128xf32>
    %cst_9 = arith.constant 1.000000e+00 : f32
    %16 = vector.broadcast %cst_9 : f32 to vector<8x128xf32>
    %17 = arith.addf %15, %16 : vector<8x128xf32>
    %cst_10 = arith.constant 5.000000e-01 : f32
    %18 = vector.broadcast %cst_10 : f32 to vector<8x128xf32>
    %19 = arith.mulf %18, %17 : vector<8x128xf32>
    %c152 = arith.constant 152 : index
    %c0_11 = arith.constant 0 : index
    %20 = vector.load %arg2[%c152, %c0_11] : memref<288x128xf32, #tpu.memory_space<vmem>>, vector<128x128xf32>
    %cst_12 = arith.constant dense<0.000000e+00> : vector<8x128xf32>
    %21 = tpu.matmul %19, %20, %cst_12 {dimension_numbers = #tpu.dot_dimension_numbers<[1], [0], [0], [1], [0, 0, 1, 1], [], []>} : vector<8x128xf32>, vector<128x128xf32>, vector<8x128xf32> -> vector<8x128xf32>
    %c280 = arith.constant 280 : index
    %c0_13 = arith.constant 0 : index
    %22 = vector.load %arg2[%c280, %c0_13] : memref<288x128xf32, #tpu.memory_space<vmem>>, vector<1x128xf32>
    %23 = vector.broadcast %22 : vector<1x128xf32> to vector<8x128xf32>
    %24 = arith.addf %21, %23 : vector<8x128xf32>
    %25 = vector.extract_strided_slice %24 {offsets = [0, 0], sizes = [8, 8], strides = [1, 1]} : vector<8x128xf32> to vector<8x8xf32>
    %c0_14 = arith.constant 0 : index
    %c0_15 = arith.constant 0 : index
    %26 = vector.load %arg3[%c0_14, %c0_15] : memref<8x8xf32, #tpu.memory_space<vmem>>, vector<8x8xf32>
    tpu.vector_store %arg3[%c0_14, %c0_15], %25 {strides = array<i32>} : memref<8x8xf32, #tpu.memory_space<vmem>>, vector<8x8xf32>,
    return
  }
  func.func @transform_0(%arg0: i32) -> (i32, i32) {
    %c0_i32 = arith.constant 0 : i32
    %c0_i32_0 = arith.constant 0 : i32
    return %arg0, %c0_i32 : i32, i32
  }
  func.func @transform_1(%arg0: i32) -> (i32, i32) {
    %c0_i32 = arith.constant 0 : i32
    %c0_i32_0 = arith.constant 0 : i32
    %c0_i32_1 = arith.constant 0 : i32
    return %c0_i32, %c0_i32_0 : i32, i32
  }
  func.func @transform_2(%arg0: i32) -> (i32, i32) {
    %c0_i32 = arith.constant 0 : i32
    %c0_i32_0 = arith.constant 0 : i32
    return %arg0, %c0_i32 : i32, i32
  }
}

</mosaic_0001>

<llo_original>
// kernel: tpu_custom_call.1
$region0: #{tpu_custom_call.1}
  #allocation0 [shape = 'u32[]', space=smem, size = 0x4, offset = 0x4, fixed_abs, tag = 'smem constant byte address 0x4 - core index']
  #allocation1 [shape = 'u32[144,128]{1,0:T(1,128)}', space=vmem, size = 0x12000, scoped, tag = 'internal scratch']
  %s0 = inlined_call_operand.hbm [shape: f32[8,8], index: 0, kind: input, shape index: {}]
  %s1 = inlined_call_operand.hbm [shape: f32[288,128], index: 1, kind: input, shape index: {}]
  %s2 = inlined_call_operand.hbm [shape: f32[8,8], index: 2, kind: output, shape index: {}]
  %s3 = sld [smem:[#allocation0]]
  $region26: #{tpu_custom_call.1} parent=0
    _
  %s5 = ssub.s32 1, %s3
  %s6 = scalar_select 0, %s5, %s3
  $region1: #{tpu_custom_call.1} parent=0
    #allocation2 [shape = 'u8[4096]{0}', space=vmem, size = 0x1000, scoped, tag = 'input window, operand 0, single buffered']
    #allocation3 [shape = 's32[1]{0}', space=sflag, size = 0x4, scoped, tag = 'scoped memory for tpu_custom_call.1']
    #allocation4 [shape = 's32[1]{0}', space=sflag, size = 0x4, scoped, tag = 'scoped memory for tpu_custom_call.1']
    #allocation5 [shape = 'u8[147456]{0}', space=vmem, size = 0x24000, scoped, tag = 'input window, operand 1, single buffered']
    #allocation6 [shape = 's32[1]{0}', space=sflag, size = 0x4, scoped, tag = 'scoped memory for tpu_custom_call.1']
    #allocation7 [shape = 'u8[4096]{0}', space=vmem, size = 0x1000, scoped, tag = 'output window, operand 0, single buffered']
    %7 = vsyncpa [#allocation3], 0
    %8 = vsyncpa [#allocation6], 0
    %9 = vsyncpa [#allocation4], 0
    // Predicated region
    $region2: #{tpu_custom_call.1} parent=1 // pred_check
      _
    $region3: #{tpu_custom_call.1} parent=1 // pred_check_branch
      %11 = sbr.rel (0) target = $region5
    $region4: #{tpu_custom_call.1} parent=1 // pred_region
      %s13 = ssub.s32 128, 128
      %14 = vsyncadd [#allocation3], %s13
      %s16 = sshll.u32 [#allocation2], 4
      %s17 = int_to_ptr.vmem [resolvable:$true] %s16
      %19 = dma.hbm_to_vmem [thread:$0]  %s0, 128, %s17, [#allocation3]
    $region5: #{tpu_custom_call.1} parent=1 // pred_fallthru
      _
    // Predicated region
    $region6: #{tpu_custom_call.1} parent=1 // pred_check
      _
    $region7: #{tpu_custom_call.1} parent=1 // pred_check_branch
      %21 = sbr.rel (0) target = $region9
    $region8: #{tpu_custom_call.1} parent=1 // pred_region
      %s23 = ssub.s32 4608, 4608
      %24 = vsyncadd [#allocation6], %s23
      %s25 = sshll.u32 [#allocation5], 4
      %s26 = int_to_ptr.vmem [resolvable:$true] %s25
      %31 = dma.hbm_to_vmem [thread:$0]  %s1, 4608, %s26, [#allocation6], 128, 128, 8
    $region9: #{tpu_custom_call.1} parent=1 // pred_fallthru
      _
    // Predicated region
    $region10: #{tpu_custom_call.1} parent=1 // pred_check
      _
    $region11: #{tpu_custom_call.1} parent=1 // pred_check_branch
      %33 = sbr.rel (0) target = $region13
    $region12: #{tpu_custom_call.1} parent=1 // pred_region
      %34 = dma.done [#allocation3], 128
    $region13: #{tpu_custom_call.1} parent=1 // pred_fallthru
      _
    // Predicated region
    $region14: #{tpu_custom_call.1} parent=1 // pred_check
      _
    $region15: #{tpu_custom_call.1} parent=1 // pred_check_branch
      %36 = sbr.rel (0) target = $region17
    $region16: #{tpu_custom_call.1} parent=1 // pred_region
      %37 = dma.done [#allocation6], 4608
    $region17: #{tpu_custom_call.1} parent=1 // pred_fallthru
      _
    %v38 = vld [vmem:[#allocation2] sm:$0xff]
    %v39 = vld [vmem:[#allocation5] sm:$0xff]
    %v40 = vld [vmem:[#allocation5 + $0x8] sm:$0x1]
    %v41 = vlaneseq
    %v42 = vshrl.u32 %v41, 7
    %v43 = vsub.s32 0, %v42
    %v44 = vrot.slane %v40, %v43
    %vm45 = vcmask 64512
    %v47 = vsel %vm45, %v38, 0
    %49 = vmatprep.subr.mxu0 0.0
    %50 = vmatpush1.msra.mxu0 0.0
    %51 = vmatprep.subr.mxu0 0.0
    %52 = vmatpush1.msra.mxu0 0.0
    %53 = vmatprep.subr.mxu0 0.0
    %54 = vmatpush1.msra.mxu0 0.0
    %55 = vmatprep.subr.mxu0 0.0
    %56 = vmatpush1.msra.mxu0 0.0
    %57 = vmatprep.subr.mxu0 0.0
    %58 = vmatpush1.msra.mxu0 0.0
    %59 = vmatprep.subr.mxu0 0.0
    %60 = vmatpush1.msra.mxu0 0.0
    %61 = vmatprep.subr.mxu0 0.0
    %62 = vmatpush1.msra.mxu0 0.0
    %63 = vmatprep.subr.mxu0 0.0
    %64 = vmatpush1.msra.mxu0 0.0
    %65 = vmatprep.subr.mxu0 0.0
    %66 = vmatpush1.msra.mxu0 0.0
    %67 = vmatprep.subr.mxu0 0.0
    %68 = vmatpush1.msra.mxu0 0.0
    %69 = vmatprep.subr.mxu0 0.0
    %70 = vmatpush1.msra.mxu0 0.0
    %71 = vmatprep.subr.mxu0 0.0
    %72 = vmatpush1.msra.mxu0 0.0
    %73 = vmatprep.subr.mxu0 0.0
    %74 = vmatpush1.msra.mxu0 0.0
    %75 = vmatprep.subr.mxu0 0.0
    %76 = vmatpush1.msra.mxu0 0.0
    %77 = vmatprep.subr.mxu0 0.0
    %78 = vmatpush1.msra.mxu0 0.0
    %79 = vmatprep.subr.mxu0 0.0
    %80 = vmatpush1.msra.mxu0 %v39
    %81 = vmatprep.subr.mxu0 0.0
    %82 = vmatpush2.msra.mxu0 0.0
    %83 = vmatprep.subr.mxu0 0.0
    %84 = vmatpush2.msra.mxu0 0.0
    %85 = vmatprep.subr.mxu0 0.0
    %86 = vmatpush2.msra.mxu0 0.0
    %87 = vmatprep.subr.mxu0 0.0
    %88 = vmatpush2.msra.mxu0 0.0
    %89 = vmatprep.subr.mxu0 0.0
    %90 = vmatpush2.msra.mxu0 0.0
    %91 = vmatprep.subr.mxu0 0.0
    %92 = vmatpush2.msra.mxu0 0.0
    %93 = vmatprep.subr.mxu0 0.0
    %94 = vmatpush2.msra.mxu0 0.0
    %95 = vmatprep.subr.mxu0 0.0
    %96 = vmatpush2.msra.mxu0 0.0
    %97 = vmatprep.subr.mxu0 0.0
    %98 = vmatpush2.msra.mxu0 0.0
    %99 = vmatprep.subr.mxu0 0.0
    %100 = vmatpush2.msra.mxu0 0.0
    %101 = vmatprep.subr.mxu0 0.0
    %102 = vmatpush2.msra.mxu0 0.0
    %103 = vmatprep.subr.mxu0 0.0
    %104 = vmatpush2.msra.mxu0 0.0
    %105 = vmatprep.subr.mxu0 0.0
    %106 = vmatpush2.msra.mxu0 0.0
    %107 = vmatprep.subr.mxu0 0.0
    %108 = vmatpush2.msra.mxu0 0.0
    %109 = vmatprep.subr.mxu0 0.0
    %110 = vmatpush2.msra.mxu0 0.0
    %111 = vmatprep.subr.mxu0 0.0
    %112 = vmatpush2.msra.mxu0 0.0
    %113 = vmatprep.mubr.f32.mxu0 0.0
    %114 = vmatmul.mubr.f32.gmra.mxu0 %v47
    %v115 = vpop.f32.mrf.mxu0
    %v116 = vadd.f32 %v44, %v115
    %v117 = vpop.f32.mrf.mxu0
    %118 = vdwg.mxu0
    %v119 = vmax.f32 %v116, 0.0
    %v120 = vld [vmem:[#allocation5 + $0x10] sm:$0xff]
    %v121 = vld [vmem:[#allocation5 + $0x18] sm:$0xff]
    %v122 = vld [vmem:[#allocation5 + $0x20] sm:$0xff]
    %v123 = vld [vmem:[#allocation5 + $0x28] sm:$0xff]
    %v124 = vld [vmem:[#allocation5 + $0x30] sm:$0xff]
    %v125 = vld [vmem:[#allocation5 + $0x38] sm:$0xff]
    %v126 = vld [vmem:[#allocation5 + $0x40] sm:$0xff]
    %v127 = vld [vmem:[#allocation5 + $0x48] sm:$0xff]
    %v128 = vld [vmem:[#allocation5 + $0x50] sm:$0xff]
    %v129 = vld [vmem:[#allocation5 + $0x58] sm:$0xff]
    %v130 = vld [vmem:[#allocation5 + $0x60] sm:$0xff]
    %v131 = vld [vmem:[#allocation5 + $0x68] sm:$0xff]
    %v132 = vld [vmem:[#allocation5 + $0x70] sm:$0xff]
    %v133 = vld [vmem:[#allocation5 + $0x78] sm:$0xff]
    %v134 = vld [vmem:[#allocation5 + $0x80] sm:$0xff]
    %v135 = vld [vmem:[#allocation5 + $0x88] sm:$0xff]
    %v136 = vld [vmem:[#allocation5 + $0x90] sm:$0x1]
    %v137 = vlaneseq
    %v138 = vshrl.u32 %v137, 7
    %v139 = vsub.s32 0, %v138
    %v140 = vrot.slane %v136, %v139
    %141 = vmatprep.subr.mxu0 0.0
    %142 = vmatpush1.msra.mxu0 %v135
    %143 = vmatprep.subr.mxu0 0.0
    %144 = vmatpush1.msra.mxu0 %v134
    %145 = vmatprep.subr.mxu0 0.0
    %146 = vmatpush1.msra.mxu0 %v133
    %147 = vmatprep.subr.mxu0 0.0
    %148 = vmatpush1.msra.mxu0 %v132
    %149 = vmatprep.subr.mxu0 0.0
    %150 = vmatpush1.msra.mxu0 %v131
    %151 = vmatprep.subr.mxu0 0.0
    %152 = vmatpush1.msra.mxu0 %v130
    %153 = vmatprep.subr.mxu0 0.0
    %154 = vmatpush1.msra.mxu0 %v129
    %155 = vmatprep.subr.mxu0 0.0
    %156 = vmatpush1.msra.mxu0 %v128
    %157 = vmatprep.subr.mxu0 0.0
    %158 = vmatpush1.msra.mxu0 %v127
    %159 = vmatprep.subr.mxu0 0.0
    %160 = vmatpush1.msra.mxu0 %v126
    %161 = vmatprep.subr.mxu0 0.0
    %162 = vmatpush1.msra.mxu0 %v125
    %163 = vmatprep.subr.mxu0 0.0
    %164 = vmatpush1.msra.mxu0 %v124
    %165 = vmatprep.subr.mxu0 0.0
    %166 = vmatpush1.msra.mxu0 %v123
    %167 = vmatprep.subr.mxu0 0.0
    %168 = vmatpush1.msra.mxu0 %v122
    %169 = vmatprep.subr.mxu0 0.0
    %170 = vmatpush1.msra.mxu0 %v121
    %171 = vmatprep.subr.mxu0 0.0
    %172 = vmatpush1.msra.mxu0 %v120
    %173 = vmatprep.subr.mxu0 0.0
    %174 = vmatpush2.msra.mxu0 0.0
    %175 = vmatprep.subr.mxu0 0.0
    %176 = vmatpush2.msra.mxu0 0.0
    %177 = vmatprep.subr.mxu0 0.0
    %178 = vmatpush2.msra.mxu0 0.0
    %179 = vmatprep.subr.mxu0 0.0
    %180 = vmatpush2.msra.mxu0 0.0
    %181 = vmatprep.subr.mxu0 0.0
    %182 = vmatpush2.msra.mxu0 0.0
    %183 = vmatprep.subr.mxu0 0.0
    %184 = vmatpush2.msra.mxu0 0.0
    %185 = vmatprep.subr.mxu0 0.0
    %186 = vmatpush2.msra.mxu0 0.0
    %187 = vmatprep.subr.mxu0 0.0
    %188 = vmatpush2.msra.mxu0 0.0
    %189 = vmatprep.subr.mxu0 0.0
    %190 = vmatpush2.msra.mxu0 0.0
    %191 = vmatprep.subr.mxu0 0.0
    %192 = vmatpush2.msra.mxu0 0.0
    %193 = vmatprep.subr.mxu0 0.0
    %194 = vmatpush2.msra.mxu0 0.0
    %195 = vmatprep.subr.mxu0 0.0
    %196 = vmatpush2.msra.mxu0 0.0
    %197 = vmatprep.subr.mxu0 0.0
    %198 = vmatpush2.msra.mxu0 0.0
    %199 = vmatprep.subr.mxu0 0.0
    %200 = vmatpush2.msra.mxu0 0.0
    %201 = vmatprep.subr.mxu0 0.0
    %202 = vmatpush2.msra.mxu0 0.0
    %203 = vmatprep.subr.mxu0 0.0
    %204 = vmatpush2.msra.mxu0 0.0
    %205 = vmatprep.mubr.f32.mxu0 0.0
    %206 = vmatmul.mubr.f32.gmra.mxu0 %v119
    %v207 = vpop.f32.mrf.mxu0
    %v208 = vadd.f32 %v140, %v207
    %v209 = vpop.f32.mrf.mxu0
    %210 = vdwg.mxu0
    %v211 = vmul.f32 %v208, 0.5
    %v212 = vtanh.pop %v211
    %v213 = vadd.f32 %v212, 1.0
    %v214 = vmul.f32 %v213, 0.5
    %v215 = vld [vmem:[#allocation5 + $0x98] sm:$0xff]
    %v216 = vld [vmem:[#allocation5 + $0xa0] sm:$0xff]
    %v217 = vld [vmem:[#allocation5 + $0xa8] sm:$0xff]
    %v218 = vld [vmem:[#allocation5 + $0xb0] sm:$0xff]
    %v219 = vld [vmem:[#allocation5 + $0xb8] sm:$0xff]
    %v220 = vld [vmem:[#allocation5 + $0xc0] sm:$0xff]
    %v221 = vld [vmem:[#allocation5 + $0xc8] sm:$0xff]
    %v222 = vld [vmem:[#allocation5 + $0xd0] sm:$0xff]
    %v223 = vld [vmem:[#allocation5 + $0xd8] sm:$0xff]
    %v224 = vld [vmem:[#allocation5 + $0xe0] sm:$0xff]
    %v225 = vld [vmem:[#allocation5 + $0xe8] sm:$0xff]
    %v226 = vld [vmem:[#allocation5 + $0xf0] sm:$0xff]
    %v227 = vld [vmem:[#allocation5 + $0xf8] sm:$0xff]
    %v228 = vld [vmem:[#allocation5 + $0x100] sm:$0xff]
    %v229 = vld [vmem:[#allocation5 + $0x108] sm:$0xff]
    %v230 = vld [vmem:[#allocation5 + $0x110] sm:$0xff]
    %v231 = vld [vmem:[#allocation5 + $0x118] sm:$0x1]
    %v232 = vlaneseq
    %v233 = vshrl.u32 %v232, 7
    %v234 = vsub.s32 0, %v233
    %v235 = vrot.slane %v231, %v234
    %236 = vmatprep.subr.mxu0 0.0
    %237 = vmatpush1.msra.mxu0 %v230
    %238 = vmatprep.subr.mxu0 0.0
    %239 = vmatpush1.msra.mxu0 %v229
    %240 = vmatprep.subr.mxu0 0.0
    %241 = vmatpush1.msra.mxu0 %v228
    %242 = vmatprep.subr.mxu0 0.0
    %243 = vmatpush1.msra.mxu0 %v227
    %244 = vmatprep.subr.mxu0 0.0
    %245 = vmatpush1.msra.mxu0 %v226
    %246 = vmatprep.subr.mxu0 0.0
    %247 = vmatpush1.msra.mxu0 %v225
    %248 = vmatprep.subr.mxu0 0.0
    %249 = vmatpush1.msra.mxu0 %v224
    %250 = vmatprep.subr.mxu0 0.0
    %251 = vmatpush1.msra.mxu0 %v223
    %252 = vmatprep.subr.mxu0 0.0
    %253 = vmatpush1.msra.mxu0 %v222
    %254 = vmatprep.subr.mxu0 0.0
    %255 = vmatpush1.msra.mxu0 %v221
    %256 = vmatprep.subr.mxu0 0.0
    %257 = vmatpush1.msra.mxu0 %v220
    %258 = vmatprep.subr.mxu0 0.0
    %259 = vmatpush1.msra.mxu0 %v219
    %260 = vmatprep.subr.mxu0 0.0
    %261 = vmatpush1.msra.mxu0 %v218
    %262 = vmatprep.subr.mxu0 0.0
    %263 = vmatpush1.msra.mxu0 %v217
    %264 = vmatprep.subr.mxu0 0.0
    %265 = vmatpush1.msra.mxu0 %v216
    %266 = vmatprep.subr.mxu0 0.0
    %267 = vmatpush1.msra.mxu0 %v215
    %268 = vmatprep.subr.mxu0 0.0
    %269 = vmatpush2.msra.mxu0 0.0
    %270 = vmatprep.subr.mxu0 0.0
    %271 = vmatpush2.msra.mxu0 0.0
    %272 = vmatprep.subr.mxu0 0.0
    %273 = vmatpush2.msra.mxu0 0.0
    %274 = vmatprep.subr.mxu0 0.0
    %275 = vmatpush2.msra.mxu0 0.0
    %276 = vmatprep.subr.mxu0 0.0
    %277 = vmatpush2.msra.mxu0 0.0
    %278 = vmatprep.subr.mxu0 0.0
    %279 = vmatpush2.msra.mxu0 0.0
    %280 = vmatprep.subr.mxu0 0.0
    %281 = vmatpush2.msra.mxu0 0.0
    %282 = vmatprep.subr.mxu0 0.0
    %283 = vmatpush2.msra.mxu0 0.0
    %284 = vmatprep.subr.mxu0 0.0
    %285 = vmatpush2.msra.mxu0 0.0
    %286 = vmatprep.subr.mxu0 0.0
    %287 = vmatpush2.msra.mxu0 0.0
    %288 = vmatprep.subr.mxu0 0.0
    %289 = vmatpush2.msra.mxu0 0.0
    %290 = vmatprep.subr.mxu0 0.0
    %291 = vmatpush2.msra.mxu0 0.0
    %292 = vmatprep.subr.mxu0 0.0
    %293 = vmatpush2.msra.mxu0 0.0
    %294 = vmatprep.subr.mxu0 0.0
    %295 = vmatpush2.msra.mxu0 0.0
    %296 = vmatprep.subr.mxu0 0.0
    %297 = vmatpush2.msra.mxu0 0.0
    %298 = vmatprep.subr.mxu0 0.0
    %299 = vmatpush2.msra.mxu0 0.0
    %300 = vmatprep.mubr.f32.mxu0 0.0
    %301 = vmatmul.mubr.f32.gmra.mxu0 %v214
    %v302 = vpop.f32.mrf.mxu0
    %v303 = vadd.f32 %v235, %v302
    %v304 = vpop.f32.mrf.mxu0
    %305 = vdwg.mxu0
    %306 = vst.msk [vmem:[#allocation7] sm:$0xff] %vm45, %v303
    // Predicated region
    $region18: #{tpu_custom_call.1} parent=1 // pred_check
      _
    $region19: #{tpu_custom_call.1} parent=1 // pred_check_branch
      %308 = sbr.rel (0) target = $region21
    $region20: #{tpu_custom_call.1} parent=1 // pred_region
      %s310 = ssub.s32 128, 128
      %311 = vsyncadd [#allocation4], %s310
      %s313 = sshll.u32 [#allocation7], 4
      %s314 = int_to_ptr.vmem [resolvable:$true] %s313
      %316 = dma.vmem_to_hbm [thread:$0]  %s314, 128, %s2, [#allocation4]
    $region21: #{tpu_custom_call.1} parent=1 // pred_fallthru
      _
    // Predicated region
    $region22: #{tpu_custom_call.1} parent=1 // pred_check
      _
    $region23: #{tpu_custom_call.1} parent=1 // pred_check_branch
      %318 = sbr.rel (0) target = $region25
    $region24: #{tpu_custom_call.1} parent=1 // pred_region
      %319 = dma.done [#allocation4], 128
    $region25: #{tpu_custom_call.1} parent=1 // pred_fallthru
      _
    %320 = vsyncpa [#allocation3], 1
    %321 = vsyncpa [#allocation6], 1
    %322 = vsyncpa [#allocation4], 1

</llo_original>
